<compile_context>
chip_gen: v6e
topology: v6e:2x2x1
jax: 0.10.0
libtpu: 0.0.40
codegen_flags: <defaults>
</compile_context>

<pallas_src>
import functools

import jax
import jax.numpy as jnp
from jax.experimental import pallas as pl
from jax.experimental.pallas import tpu as pltpu

_LANE = 128


def _mse_kernel(pred_ref, real_ref, out_ref, acc_ref, *,
                n_elems, valid_rows, block_rows, mask_tail):
    step = pl.program_id(0)

    # Accumulator init on the first grid step.
    @pl.when(step == 0)
    def _():
        acc_ref[...] = jnp.zeros_like(acc_ref)

    d = real_ref[...].astype(jnp.float32) - pred_ref[...].astype(jnp.float32)

    if mask_tail:
        # Zero out rows past the end of the real data in the partial tail
        # block; their VMEM contents are undefined (no OOB check on TPU).
        row = jax.lax.broadcasted_iota(jnp.int32, d.shape, 0) + step * block_rows
        d = jnp.where(row < valid_rows, d, 0.0)

    # Steady state: pure elementwise VPU adds (no per-step cross-lane reduce).
    acc_ref[...] += d * d

    # Finalize: single cross-lane reduce + divide by the true element count.
    @pl.when(step == pl.num_programs(0) - 1)
    def _():
        total = jnp.sum(acc_ref[...])
        out_ref[...] = jnp.broadcast_to(total / n_elems, (1, 1))


def mse(pred, real, *, block_rows=2048):
    """Pallas equivalent of the PyTorch MSE module's forward(pred, real)."""
    assert pred.shape == real.shape, "pred/real must have the same shape"
    n = int(pred.size)

    p = pred.reshape(-1)
    r = real.reshape(-1)

    # Only pad when n is not lane-aligned (rare); padded zeros contribute 0.
    rem = n % _LANE
    if rem:
        pad = _LANE - rem
        p = jnp.pad(p, (0, pad))
        r = jnp.pad(r, (0, pad))

    rows = p.shape[0] // _LANE
    p = p.reshape(rows, _LANE)
    r = r.reshape(rows, _LANE)

    if rows <= block_rows:
        block_rows = rows                            # single full-extent block
    else:
        block_rows = max(8, (block_rows // 8) * 8)   # sublane-aligned tile

    grid = (pl.cdiv(rows, block_rows),)
    mask_tail = (rows % block_rows) != 0

    bytes_per_elem = jnp.dtype(pred.dtype).itemsize
    cost = pl.CostEstimate(
        flops=3 * n,                 # sub, mul, add per element
        transcendentals=0,
        bytes_accessed=2 * n * bytes_per_elem + 4,
    )

    # TODO(synk): on v7x the reduction could additionally be split across the
    # two TensorCores (leading size-2 "parallel" grid axis with per-core
    # partial sums combined in the wrapper) for up to ~2x; omitted to keep a
    # single code path that is safe on single-TC v5e/v6e.
    out = pl.pallas_call(
        functools.partial(
            _mse_kernel,
            n_elems=float(n),
            valid_rows=rows,
            block_rows=block_rows,
            mask_tail=mask_tail,
        ),
        out_shape=jax.ShapeDtypeStruct((1, 1), jnp.float32),
        grid_spec=pltpu.PrefetchScalarGridSpec(
            num_scalar_prefetch=0,
            grid=grid,
            in_specs=[
                pl.BlockSpec((block_rows, _LANE), lambda i: (i, 0)),
                pl.BlockSpec((block_rows, _LANE), lambda i: (i, 0)),
            ],
            # Same output block across the whole (reduction) grid axis.
            out_specs=pl.BlockSpec((1, 1), lambda i: (0, 0)),
            scratch_shapes=[pltpu.VMEM((block_rows, _LANE), jnp.float32)],
        ),
        compiler_params=pltpu.CompilerParams(
            dimension_semantics=("arbitrary",),
        ),
        cost_estimate=cost,
    )(p, r)
    return out[0, 0]  # 0-d scalar, matching torch.sum(...)/n semantics


if __name__ == "__main__":
    key = jax.random.PRNGKey(0)
    k1, k2 = jax.random.split(key)
    # Small NCHW-like shapes, consistent with a typical prediction tensor.
    pred = jax.random.normal(k1, (2, 4, 16, 16), dtype=jnp.float32)
    real = jax.random.normal(k2, (2, 4, 16, 16), dtype=jnp.float32)

    result = jax.block_until_ready(mse(pred, real))

    # Pure-JAX reference check.
    ref = jnp.mean((real - pred) ** 2)
    assert jnp.allclose(result, ref, rtol=1e-6, atol=1e-6), (result, ref)

    print("KERNEL_OK")
</pallas_src>

<mosaic_0001>
module attributes {stable_mosaic.version = 11 : i64} {
  func.func @_mse_kernel(%arg0: i32, %arg1: memref<16x128xf32, #tpu.memory_space<vmem>>, %arg2: memref<16x128xf32, #tpu.memory_space<vmem>>, %arg3: memref<1x1xf32, #tpu.memory_space<vmem>>, %arg4: memref<16x128xf32, #tpu.memory_space<vmem>>) attributes {dimension_semantics = [#tpu.dimension_semantics<arbitrary>], iteration_bounds = array<i64: 1>, scalar_prefetch = 0 : i64, scratch_operands = 1 : i64, tpu.core_type = #tpu.core_type<tc>, window_params = [{transform_indices = @transform_0, window_bounds = array<i64: 16, 128>}, {transform_indices = @transform_1, window_bounds = array<i64: 16, 128>}, {pipeline_mode = #tpu.pipeline_mode<synchronous>, transform_indices = @transform_2, window_bounds = array<i64: 1, 1>}]} {
    %c0_i32 = arith.constant 0 : i32
    %0 = arith.cmpi eq, %arg0, %c0_i32 : i32
    %1 = arith.extui %0 : i1 to i32
    %c0_i32_0 = arith.constant 0 : i32
    %2 = arith.cmpi ne, %1, %c0_i32_0 : i32
    scf.if %2 {
      %cst = arith.constant 0.000000e+00 : f32
      %13 = vector.broadcast %cst : f32 to vector<16x128xf32>
      %c0_10 = arith.constant 0 : index
      %c0_11 = arith.constant 0 : index
      %14 = vector.load %arg4[%c0_10, %c0_11] : memref<16x128xf32, #tpu.memory_space<vmem>>, vector<16x128xf32>
      tpu.vector_store %arg4[%c0_10, %c0_11], %13 {strides = array<i32>} : memref<16x128xf32, #tpu.memory_space<vmem>>, vector<16x128xf32>,
    } else {
    }
    %c0 = arith.constant 0 : index
    %c0_1 = arith.constant 0 : index
    %3 = vector.load %arg2[%c0, %c0_1] : memref<16x128xf32, #tpu.memory_space<vmem>>, vector<16x128xf32>
    %c0_2 = arith.constant 0 : index
    %c0_3 = arith.constant 0 : index
    %4 = vector.load %arg1[%c0_2, %c0_3] : memref<16x128xf32, #tpu.memory_space<vmem>>, vector<16x128xf32>
    %5 = arith.subf %3, %4 : vector<16x128xf32>
    %c0_4 = arith.constant 0 : index
    %c0_5 = arith.constant 0 : index
    %6 = vector.load %arg4[%c0_4, %c0_5] : memref<16x128xf32, #tpu.memory_space<vmem>>, vector<16x128xf32>
    %7 = arith.mulf %5, %5 : vector<16x128xf32>
    %8 = arith.addf %6, %7 : vector<16x128xf32>
    %c0_6 = arith.constant 0 : index
    %c0_7 = arith.constant 0 : index
    %9 = vector.load %arg4[%c0_6, %c0_7] : memref<16x128xf32, #tpu.memory_space<vmem>>, vector<16x128xf32>
    tpu.vector_store %arg4[%c0_6, %c0_7], %8 {strides = array<i32>} : memref<16x128xf32, #tpu.memory_space<vmem>>, vector<16x128xf32>,
    %c0_i32_8 = arith.constant 0 : i32
    %10 = arith.cmpi eq, %arg0, %c0_i32_8 : i32
    %11 = arith.extui %10 : i1 to i32
    %c0_i32_9 = arith.constant 0 : i32
    %12 = arith.cmpi ne, %11, %c0_i32_9 : i32
    scf.if %12 {
      %c0_10 = arith.constant 0 : index
      %c0_11 = arith.constant 0 : index
      %13 = vector.load %arg4[%c0_10, %c0_11] : memref<16x128xf32, #tpu.memory_space<vmem>>, vector<16x128xf32>
      %14 = vector.shape_cast %13 : vector<16x128xf32> to vector<1x16x128xf32>
      %cst = arith.constant dense<0.000000e+00> : vector<1xf32>
      %15 = vector.multi_reduction <add>, %14, %cst [1, 2] : vector<1x16x128xf32> to vector<1xf32>
      %16 = vector.shape_cast %15 : vector<1xf32> to vector<1x1x1xf32>
      %17 = vector.extract %16[0, 0, 0] : f32 from vector<1x1x1xf32>
      %cst_12 = arith.constant 2.048000e+03 : f32
      %18 = arith.divf %17, %cst_12 : f32
      %19 = vector.broadcast %18 : f32 to vector<1x1xf32>
      %c0_13 = arith.constant 0 : index
      %c0_14 = arith.constant 0 : index
      %20 = vector.load %arg3[%c0_13, %c0_14] : memref<1x1xf32, #tpu.memory_space<vmem>>, vector<1x1xf32>
      tpu.vector_store %arg3[%c0_13, %c0_14], %19 {strides = array<i32>} : memref<1x1xf32, #tpu.memory_space<vmem>>, vector<1x1xf32>,
    } else {
    }
    return
  }
  func.func @transform_0(%arg0: i32) -> (i32, i32) {
    %c0_i32 = arith.constant 0 : i32
    %c0_i32_0 = arith.constant 0 : i32
    return %arg0, %c0_i32 : i32, i32
  }
  func.func @transform_1(%arg0: i32) -> (i32, i32) {
    %c0_i32 = arith.constant 0 : i32
    %c0_i32_0 = arith.constant 0 : i32
    return %arg0, %c0_i32 : i32, i32
  }
  func.func @transform_2(%arg0: i32) -> (i32, i32) {
    %c0_i32 = arith.constant 0 : i32
    %c0_i32_0 = arith.constant 0 : i32
    %c0_i32_1 = arith.constant 0 : i32
    return %c0_i32, %c0_i32_0 : i32, i32
  }
}

</mosaic_0001>

<llo_original>
// kernel: tpu_custom_call.1
$region0: #{tpu_custom_call.1}
  #allocation0 [shape = 'u32[]', space=smem, size = 0x4, offset = 0x4, fixed_abs, tag = 'smem constant byte address 0x4 - core index']
  #allocation1 [shape = 'u32[144,128]{1,0:T(1,128)}', space=vmem, size = 0x12000, scoped, tag = 'internal scratch']
  #allocation2 [shape = 'f32[16,128]{1,0:T(8,128)}', space=vmem, size = 0x2000, scoped, tag = 'scratch operand']
  %s0 = inlined_call_operand.hbm [shape: f32[16,128], index: 0, kind: input, shape index: {}]
  %s1 = inlined_call_operand.hbm [shape: f32[16,128], index: 1, kind: input, shape index: {}]
  %s2 = inlined_call_operand.hbm [shape: f32[1,1], index: 2, kind: output, shape index: {}]
  %s3 = sld [smem:[#allocation0]]
  $region34: #{tpu_custom_call.1} parent=0
    _
  %s5 = ssub.s32 1, %s3
  %s6 = scalar_select 0, %s5, %s3
  $region1: #{tpu_custom_call.1} parent=0
    #allocation3 [shape = 'u8[8192]{0}', space=vmem, size = 0x2000, scoped, tag = 'input window, operand 0, single buffered']
    #allocation4 [shape = 's32[1]{0}', space=sflag, size = 0x4, scoped, tag = 'scoped memory for tpu_custom_call.1']
    #allocation5 [shape = 's32[1]{0}', space=sflag, size = 0x4, scoped, tag = 'scoped memory for tpu_custom_call.1']
    #allocation6 [shape = 'u8[8192]{0}', space=vmem, size = 0x2000, scoped, tag = 'input window, operand 1, single buffered']
    #allocation7 [shape = 's32[1]{0}', space=sflag, size = 0x4, scoped, tag = 'scoped memory for tpu_custom_call.1']
    #allocation8 [shape = 'u8[512]{0}', space=vmem, size = 0x400, scoped, tag = 'output window, operand 0, single buffered']
    %7 = vsyncpa [#allocation4], 0
    %8 = vsyncpa [#allocation7], 0
    %9 = vsyncpa [#allocation5], 0
    // Predicated region
    $region2: #{tpu_custom_call.1} parent=1 // pred_check
      _
    $region3: #{tpu_custom_call.1} parent=1 // pred_check_branch
      %11 = sbr.rel (0) target = $region5
    $region4: #{tpu_custom_call.1} parent=1 // pred_region
      %s13 = ssub.s32 256, 256
      %14 = vsyncadd [#allocation4], %s13
      %s15 = sshll.u32 [#allocation3], 4
      %s16 = int_to_ptr.vmem [resolvable:$true] %s15
      %21 = dma.hbm_to_vmem [thread:$0]  %s0, 256, %s16, [#allocation4], 128, 128, 8
    $region5: #{tpu_custom_call.1} parent=1 // pred_fallthru
      _
    // Predicated region
    $region6: #{tpu_custom_call.1} parent=1 // pred_check
      _
    $region7: #{tpu_custom_call.1} parent=1 // pred_check_branch
      %23 = sbr.rel (0) target = $region9
    $region8: #{tpu_custom_call.1} parent=1 // pred_region
      %s25 = ssub.s32 256, 256
      %26 = vsyncadd [#allocation7], %s25
      %s27 = sshll.u32 [#allocation6], 4
      %s28 = int_to_ptr.vmem [resolvable:$true] %s27
      %33 = dma.hbm_to_vmem [thread:$0]  %s1, 256, %s28, [#allocation7], 128, 128, 8
    $region9: #{tpu_custom_call.1} parent=1 // pred_fallthru
      _
    // Predicated region
    $region10: #{tpu_custom_call.1} parent=1 // pred_check
      _
    $region11: #{tpu_custom_call.1} parent=1 // pred_check_branch
      %35 = sbr.rel (0) target = $region13
    $region12: #{tpu_custom_call.1} parent=1 // pred_region
      %36 = dma.done [#allocation4], 256
    $region13: #{tpu_custom_call.1} parent=1 // pred_fallthru
      _
    // Predicated region
    $region14: #{tpu_custom_call.1} parent=1 // pred_check
      _
    $region15: #{tpu_custom_call.1} parent=1 // pred_check_branch
      %38 = sbr.rel (0) target = $region17
    $region16: #{tpu_custom_call.1} parent=1 // pred_region
      %39 = dma.done [#allocation7], 256
    $region17: #{tpu_custom_call.1} parent=1 // pred_fallthru
      _
    %p40 = scmp.eq.s32.totalorder 0, 0
    // Predicated region
    $region18: #{tpu_custom_call.1} parent=1 // pred_check
      %p41 = pneg %p40
    $region19: #{tpu_custom_call.1} parent=1 // pred_check_branch
      %43 = sbr.rel (%p41) target = $region21
    $region20: #{tpu_custom_call.1} parent=1 // pred_region
      %44 = vst [vmem:[#allocation2] sm:$0xff] 0.0
      %45 = vst [vmem:[#allocation2 + $0x8] sm:$0xff] 0.0
    $region21: #{tpu_custom_call.1} parent=1 // pred_fallthru
      _
    %v46 = vld [vmem:[#allocation6] sm:$0xff]
    %v47 = vld [vmem:[#allocation6 + $0x8] sm:$0xff]
    %v48 = vld [vmem:[#allocation3] sm:$0xff]
    %v49 = vld [vmem:[#allocation3 + $0x8] sm:$0xff]
    %v50 = vsub.f32 %v46, %v48
    %v51 = vsub.f32 %v47, %v49
    %v52 = vld [vmem:[#allocation2] sm:$0xff]
    %v53 = vld [vmem:[#allocation2 + $0x8] sm:$0xff]
    %v54 = vmul.f32 %v50, %v50
    %v55 = vmul.f32 %v51, %v51
    %v56 = vadd.f32 %v52, %v54
    %v57 = vadd.f32 %v53, %v55
    %58 = vst [vmem:[#allocation2] sm:$0xff] %v56
    %59 = vst [vmem:[#allocation2 + $0x8] sm:$0xff] %v57
    // Predicated region
    $region22: #{tpu_custom_call.1} parent=1 // pred_check
      %p60 = pneg %p40
    $region23: #{tpu_custom_call.1} parent=1 // pred_check_branch
      %62 = sbr.rel (%p60) target = $region25
    $region24: #{tpu_custom_call.1} parent=1 // pred_region
      %v63 = vld [vmem:[#allocation2] sm:$0xff]
      %v64 = vld [vmem:[#allocation2 + $0x8] sm:$0xff]
      %v65 = vadd.f32 %v63, %v64
      %66 = vadd.xlane.f32.xlu0 %v65
      %v67 = vpop.xlane.xlu0 %66
      %v68 = vrot.slane %v67, 4
      %v69 = vadd.f32 %v67, %v68
      %v70 = vrot.slane %v69, 2
      %v71 = vadd.f32 %v69, %v70
      %v72 = vrot.slane %v71, 1
      %v73 = vadd.f32 %v71, %v72
      %s74 = vtos %v73
      %v75 = vrcp.pop 2048.0
      %s76 = vtos %v75
      %s77 = smul.f32 %s74, %s76
      %v78 = vstv %s77
      %vm79 = vcmask 0
      %80 = vst.msk [vmem:[#allocation8] sm:$0x1] %vm79, %v78
    $region25: #{tpu_custom_call.1} parent=1 // pred_fallthru
      _
    // Predicated region
    $region26: #{tpu_custom_call.1} parent=1 // pred_check
      _
    $region27: #{tpu_custom_call.1} parent=1 // pred_check_branch
      %82 = sbr.rel (0) target = $region29
    $region28: #{tpu_custom_call.1} parent=1 // pred_region
      %s84 = ssub.s32 16, 16
      %85 = vsyncadd [#allocation5], %s84
      %s87 = sshll.u32 [#allocation8], 4
      %s88 = int_to_ptr.vmem [resolvable:$true] %s87
      %90 = dma.vmem_to_hbm [thread:$0]  %s88, 16, %s2, [#allocation5]
    $region29: #{tpu_custom_call.1} parent=1 // pred_fallthru
      _
    // Predicated region
    $region30: #{tpu_custom_call.1} parent=1 // pred_check
      _
    $region31: #{tpu_custom_call.1} parent=1 // pred_check_branch
      %92 = sbr.rel (0) target = $region33
    $region32: #{tpu_custom_call.1} parent=1 // pred_region
      %93 = dma.done [#allocation5], 16
    $region33: #{tpu_custom_call.1} parent=1 // pred_fallthru
      _
    %94 = vsyncpa [#allocation4], 1
    %95 = vsyncpa [#allocation7], 1
    %96 = vsyncpa [#allocation5], 1

</llo_original>
